<compile_context>
chip_gen: v7x
topology: tpu7x:2x2x1
jax: 0.10.0
libtpu: 0.0.40
codegen_flags: <defaults>
</compile_context>

<pallas_src>
import jax
import jax.numpy as jnp
from jax.experimental import pallas as pl
from jax.experimental.pallas import tpu as pltpu

LANE = 128     # lane width (last-dim granularity)
SUBLANE = 8    # sublane width (second-to-last-dim granularity)


def _round_up(n, m):
    return ((n + m - 1) // m) * m


def _cdiv(a, b):
    return (a + b - 1) // b


# --------------------------------------------------------------------------
# Kernel: one packed batch tile per grid step -> 3 MXU matmuls + VPU bias/ReLU.
# --------------------------------------------------------------------------
def generator_kernel(x_ref, w1_ref, b1_ref, w2_ref, b2_ref, w3_ref, b3_ref, o_ref):
    # x arrives raw (f32) from HBM; the cast to the matmul dtype happens here
    # on the VPU so the wrapper never writes a second copy of x to HBM.
    x = x_ref[...].astype(w1_ref.dtype)

    h = jnp.dot(x, w1_ref[...], preferred_element_type=jnp.float32) + b1_ref[...]
    h = jnp.maximum(h, 0.0).astype(w2_ref.dtype)

    h = jnp.dot(h, w2_ref[...], preferred_element_type=jnp.float32) + b2_ref[...]
    h = jnp.maximum(h, 0.0).astype(w3_ref.dtype)

    out = jnp.dot(h, w3_ref[...], preferred_element_type=jnp.float32) + b3_ref[...]
    o_ref[...] = out.astype(o_ref.dtype)     # bf16 store by default


# --------------------------------------------------------------------------
# Parameter / layout preparation (would run once at load time in deployment).
# --------------------------------------------------------------------------
def _packing_factor(in_size, hidden, out_size, max_packed=1024):
    """How many samples to pack per 128-lane row (block-diagonal weights)."""
    if in_size >= LANE:
        return 1
    p = LANE // in_size
    widest = max(in_size, hidden, out_size)
    while p > 1 and p * widest > max_packed:   # keep packed weights tiny
        p -= 1
    return max(p, 1)


def pack_params(params, pack, compute_dtype):
    """Block-diagonal weights (kron(I_P, W)) and lane-tiled biases."""
    def wpack(w):
        if pack > 1:
            w = jnp.kron(jnp.eye(pack, dtype=w.dtype), w)
        return w.astype(compute_dtype)

    def bpack(b):
        if pack > 1:
            b = jnp.tile(b, (1, pack))
        return b.astype(jnp.float32)           # f32 bias/ReLU epilogue (v5e-safe)

    return (wpack(params["w1"]), bpack(params["b1"]),
            wpack(params["w2"]), bpack(params["b2"]),
            wpack(params["w3"]), bpack(params["b3"]))


def _choose_tile_rows(n_rows, max_tile_rows):
    if n_rows <= max_tile_rows:
        return n_rows                          # single full-array block: no pad
    n_tiles = _cdiv(n_rows, max_tile_rows)
    if n_tiles % 2:
        n_tiles += 1                           # even tile count -> both v7x TCs busy
    return _round_up(_cdiv(n_rows, n_tiles), SUBLANE)


# --------------------------------------------------------------------------
# Forward wrapper.
# --------------------------------------------------------------------------
def generator_forward(x, params, *, compute_dtype=jnp.bfloat16,
                      out_dtype=jnp.bfloat16, max_tile_rows=1024):
    """x: (B, input_size) f32. params: (in,out) weights, (1,out) biases."""
    B, in_size = x.shape
    hid = params["w1"].shape[1]
    out_size = params["w3"].shape[1]

    pack = _packing_factor(in_size, hid, out_size)
    w1p, b1p, w2p, b2p, w3p, b3p = pack_params(params, pack, compute_dtype)

    k_packed = pack * in_size                  # lane-dense input width
    n_packed = pack * out_size                 # lane-dense output width

    n_rows = _cdiv(B, pack)                    # packed rows of the batch
    tile_rows = _choose_tile_rows(n_rows, max_tile_rows)
    n_rows_pad = _round_up(n_rows, tile_rows)
    b_pad = n_rows_pad * pack

    if b_pad != B:                             # small, only when B not aligned
        x = jnp.pad(x, ((0, b_pad - B), (0, 0)))
    x_packed = x.reshape(n_rows_pad, k_packed)  # row-major contiguous: free

    grid = (n_rows_pad // tile_rows,)
    stream = lambda cols: pl.BlockSpec((tile_rows, cols), lambda i: (i, 0))
    resident = lambda a: pl.BlockSpec(a.shape, lambda i: (0, 0))  # VMEM-resident

    out = pl.pallas_call(
        generator_kernel,
        out_shape=jax.ShapeDtypeStruct((n_rows_pad, n_packed), out_dtype),
        grid=grid,
        in_specs=[stream(k_packed),
                  resident(w1p), resident(b1p),
                  resident(w2p), resident(b2p),
                  resident(w3p), resident(b3p)],
        out_specs=stream(n_packed),
        compiler_params=pltpu.CompilerParams(
            dimension_semantics=("parallel",),  # shard batch tiles across TCs (v7x)
        ),
    )(x_packed, w1p, b1p, w2p, b2p, w3p, b3p)

    out = out.reshape(b_pad, out_size)          # contiguous: free
    if b_pad != B:
        out = out[:B]                           # only materializes when padded
    return out


# --------------------------------------------------------------------------
# Init + reference (mirrors nn.Linear with U(-1/sqrt(fan_in), 1/sqrt(fan_in))).
# Weights stored transposed: (in_features, out_features).
# --------------------------------------------------------------------------
def init_params(key, input_size, hidden_size, output_size):
    ks = jax.random.split(key, 6)

    def linear(kw, kb, fan_in, fan_out):
        bound = 1.0 / jnp.sqrt(fan_in)
        w = jax.random.uniform(kw, (fan_in, fan_out), jnp.float32, -bound, bound)
        b = jax.random.uniform(kb, (1, fan_out), jnp.float32, -bound, bound)
        return w, b

    w1, b1 = linear(ks[0], ks[1], input_size, hidden_size)
    w2, b2 = linear(ks[2], ks[3], hidden_size, hidden_size)
    w3, b3 = linear(ks[4], ks[5], hidden_size, output_size)
    return {"w1": w1, "b1": b1, "w2": w2, "b2": b2, "w3": w3, "b3": b3}


def generator_ref(x, p):
    h1 = jnp.maximum(x @ p["w1"] + p["b1"], 0.0)
    h2 = jnp.maximum(h1 @ p["w2"] + p["b2"], 0.0)
    return h2 @ p["w3"] + p["b3"]


if __name__ == "__main__":
    input_size, hidden_size, output_size = 16, 32, 16

    key = jax.random.PRNGKey(0)
    kx, kp, kx2, kx3 = jax.random.split(key, 4)
    params = init_params(kp, input_size, hidden_size, output_size)

    fwd = jax.jit(generator_forward,
                  static_argnames=("compute_dtype", "out_dtype", "max_tile_rows"))

    # 1) Small batch (single grid tile, batch divisible by the packing factor).
    x = jax.random.normal(kx, (8, input_size), jnp.float32)
    out = jax.block_until_ready(fwd(x, params))
    ref = generator_ref(x, params)
    assert out.shape == (8, output_size) and out.dtype == jnp.bfloat16
    assert jnp.allclose(out.astype(jnp.float32), ref, atol=5e-2, rtol=5e-2), \
        "mismatch vs reference (small batch)"

    # 2) Batch not a multiple of the packing factor -> exercises pad + row slice.
    x2 = jax.random.normal(kx2, (37, input_size), jnp.float32)
    out2 = jax.block_until_ready(fwd(x2, params))
    ref2 = generator_ref(x2, params)
    assert out2.shape == (37, output_size)
    assert jnp.allclose(out2.astype(jnp.float32), ref2, atol=5e-2, rtol=5e-2), \
        "mismatch vs reference (unaligned batch)"

    # 3) Larger batch with a small tile cap -> multi-tile pipelined grid
    #    (exercises double-buffered streaming and the parallel batch axis).
    x3 = jax.random.normal(kx3, (1000, input_size), jnp.float32)
    out3 = jax.block_until_ready(fwd(x3, params, max_tile_rows=32))
    ref3 = generator_ref(x3, params)
    assert out3.shape == (1000, output_size)
    assert jnp.allclose(out3.astype(jnp.float32), ref3, atol=5e-2, rtol=5e-2), \
        "mismatch vs reference (tiled batch)"

    print("KERNEL_OK")
</pallas_src>

<mosaic_0001>
module attributes {stable_mosaic.version = 11 : i64} {
  func.func @generator_kernel(%arg0: i32, %arg1: memref<1x128xf32, #tpu.memory_space<vmem>>, %arg2: memref<128x256xbf16, #tpu.memory_space<vmem>>, %arg3: memref<1x256xf32, #tpu.memory_space<vmem>>, %arg4: memref<256x256xbf16, #tpu.memory_space<vmem>>, %arg5: memref<1x256xf32, #tpu.memory_space<vmem>>, %arg6: memref<256x128xbf16, #tpu.memory_space<vmem>>, %arg7: memref<1x128xf32, #tpu.memory_space<vmem>>, %arg8: memref<1x128xbf16, #tpu.memory_space<vmem>>) attributes {dimension_semantics = [#tpu.dimension_semantics<parallel>], iteration_bounds = array<i64: 1>, scalar_prefetch = 0 : i64, scratch_operands = 0 : i64, tpu.core_type = #tpu.core_type<tc>, window_params = [{transform_indices = @transform_0, window_bounds = array<i64: 1, 128>}, {pipeline_mode = #tpu.pipeline_mode<synchronous>, transform_indices = @transform_1, window_bounds = array<i64: 128, 256>}, {pipeline_mode = #tpu.pipeline_mode<synchronous>, transform_indices = @transform_2, window_bounds = array<i64: 1, 256>}, {pipeline_mode = #tpu.pipeline_mode<synchronous>, transform_indices = @transform_3, window_bounds = array<i64: 256, 256>}, {pipeline_mode = #tpu.pipeline_mode<synchronous>, transform_indices = @transform_4, window_bounds = array<i64: 1, 256>}, {pipeline_mode = #tpu.pipeline_mode<synchronous>, transform_indices = @transform_5, window_bounds = array<i64: 256, 128>}, {pipeline_mode = #tpu.pipeline_mode<synchronous>, transform_indices = @transform_6, window_bounds = array<i64: 1, 128>}, {transform_indices = @transform_7, window_bounds = array<i64: 1, 128>}]} {
    %c0 = arith.constant 0 : index
    %c0_0 = arith.constant 0 : index
    %0 = vector.load %arg1[%c0, %c0_0] : memref<1x128xf32, #tpu.memory_space<vmem>>, vector<1x128xf32>
    %1 = arith.truncf %0 : vector<1x128xf32> to vector<1x128xbf16>
    %c0_1 = arith.constant 0 : index
    %c0_2 = arith.constant 0 : index
    %2 = vector.load %arg2[%c0_1, %c0_2] : memref<128x256xbf16, #tpu.memory_space<vmem>>, vector<128x256xbf16>
    %cst = arith.constant dense<0.000000e+00> : vector<1x256xf32>
    %3 = tpu.matmul %1, %2, %cst {dimension_numbers = #tpu.dot_dimension_numbers<[1], [0], [0], [1], [0, 0, 1, 1], [], []>} : vector<1x128xbf16>, vector<128x256xbf16>, vector<1x256xf32> -> vector<1x256xf32>
    %c0_3 = arith.constant 0 : index
    %c0_4 = arith.constant 0 : index
    %4 = vector.load %arg3[%c0_3, %c0_4] : memref<1x256xf32, #tpu.memory_space<vmem>>, vector<1x256xf32>
    %5 = arith.addf %3, %4 : vector<1x256xf32>
    %cst_5 = arith.constant 0.000000e+00 : f32
    %6 = vector.broadcast %cst_5 : f32 to vector<1x256xf32>
    %7 = arith.maximumf %5, %6 : vector<1x256xf32>
    %8 = arith.truncf %7 : vector<1x256xf32> to vector<1x256xbf16>
    %c0_6 = arith.constant 0 : index
    %c0_7 = arith.constant 0 : index
    %9 = vector.load %arg4[%c0_6, %c0_7] : memref<256x256xbf16, #tpu.memory_space<vmem>>, vector<256x256xbf16>
    %cst_8 = arith.constant dense<0.000000e+00> : vector<1x256xf32>
    %10 = tpu.matmul %8, %9, %cst_8 {dimension_numbers = #tpu.dot_dimension_numbers<[1], [0], [0], [1], [0, 0, 1, 1], [], []>} : vector<1x256xbf16>, vector<256x256xbf16>, vector<1x256xf32> -> vector<1x256xf32>
    %c0_9 = arith.constant 0 : index
    %c0_10 = arith.constant 0 : index
    %11 = vector.load %arg5[%c0_9, %c0_10] : memref<1x256xf32, #tpu.memory_space<vmem>>, vector<1x256xf32>
    %12 = arith.addf %10, %11 : vector<1x256xf32>
    %cst_11 = arith.constant 0.000000e+00 : f32
    %13 = vector.broadcast %cst_11 : f32 to vector<1x256xf32>
    %14 = arith.maximumf %12, %13 : vector<1x256xf32>
    %15 = arith.truncf %14 : vector<1x256xf32> to vector<1x256xbf16>
    %c0_12 = arith.constant 0 : index
    %c0_13 = arith.constant 0 : index
    %16 = vector.load %arg6[%c0_12, %c0_13] : memref<256x128xbf16, #tpu.memory_space<vmem>>, vector<256x128xbf16>
    %cst_14 = arith.constant dense<0.000000e+00> : vector<1x128xf32>
    %17 = tpu.matmul %15, %16, %cst_14 {dimension_numbers = #tpu.dot_dimension_numbers<[1], [0], [0], [1], [0, 0, 1, 1], [], []>} : vector<1x256xbf16>, vector<256x128xbf16>, vector<1x128xf32> -> vector<1x128xf32>
    %c0_15 = arith.constant 0 : index
    %c0_16 = arith.constant 0 : index
    %18 = vector.load %arg7[%c0_15, %c0_16] : memref<1x128xf32, #tpu.memory_space<vmem>>, vector<1x128xf32>
    %19 = arith.addf %17, %18 : vector<1x128xf32>
    %20 = arith.truncf %19 : vector<1x128xf32> to vector<1x128xbf16>
    %c0_17 = arith.constant 0 : index
    %c0_18 = arith.constant 0 : index
    %21 = vector.load %arg8[%c0_17, %c0_18] : memref<1x128xbf16, #tpu.memory_space<vmem>>, vector<1x128xbf16>
    tpu.vector_store %arg8[%c0_17, %c0_18], %20 {strides = array<i32>} : memref<1x128xbf16, #tpu.memory_space<vmem>>, vector<1x128xbf16>,
    return
  }
  func.func @transform_0(%arg0: i32) -> (i32, i32) {
    %c0_i32 = arith.constant 0 : i32
    %c0_i32_0 = arith.constant 0 : i32
    return %arg0, %c0_i32 : i32, i32
  }
  func.func @transform_1(%arg0: i32) -> (i32, i32) {
    %c0_i32 = arith.constant 0 : i32
    %c0_i32_0 = arith.constant 0 : i32
    %c0_i32_1 = arith.constant 0 : i32
    return %c0_i32, %c0_i32_0 : i32, i32
  }
  func.func @transform_2(%arg0: i32) -> (i32, i32) {
    %c0_i32 = arith.constant 0 : i32
    %c0_i32_0 = arith.constant 0 : i32
    %c0_i32_1 = arith.constant 0 : i32
    return %c0_i32, %c0_i32_0 : i32, i32
  }
  func.func @transform_3(%arg0: i32) -> (i32, i32) {
    %c0_i32 = arith.constant 0 : i32
    %c0_i32_0 = arith.constant 0 : i32
    %c0_i32_1 = arith.constant 0 : i32
    return %c0_i32, %c0_i32_0 : i32, i32
  }
  func.func @transform_4(%arg0: i32) -> (i32, i32) {
    %c0_i32 = arith.constant 0 : i32
    %c0_i32_0 = arith.constant 0 : i32
    %c0_i32_1 = arith.constant 0 : i32
    return %c0_i32, %c0_i32_0 : i32, i32
  }
  func.func @transform_5(%arg0: i32) -> (i32, i32) {
    %c0_i32 = arith.constant 0 : i32
    %c0_i32_0 = arith.constant 0 : i32
    %c0_i32_1 = arith.constant 0 : i32
    return %c0_i32, %c0_i32_0 : i32, i32
  }
  func.func @transform_6(%arg0: i32) -> (i32, i32) {
    %c0_i32 = arith.constant 0 : i32
    %c0_i32_0 = arith.constant 0 : i32
    %c0_i32_1 = arith.constant 0 : i32
    return %c0_i32, %c0_i32_0 : i32, i32
  }
  func.func @transform_7(%arg0: i32) -> (i32, i32) {
    %c0_i32 = arith.constant 0 : i32
    %c0_i32_0 = arith.constant 0 : i32
    return %arg0, %c0_i32 : i32, i32
  }
}

</mosaic_0001>

<llo_original>
// kernel: generator_forward.1
$region0: #{generator_forward.1}
  #allocation0 [shape = 'u32[]', space=smem, size = 0x4, offset = 0x4, fixed_abs, tag = 'smem constant byte address 0x4 - core index']
  #allocation1 [shape = 'u32[144,128]{1,0:T(1,128)}', space=vmem, size = 0x12000, scoped, tag = 'internal scratch']
  %s0 = inlined_call_operand.vmem [shape: f32[1,128], index: 0, kind: input, shape index: {}]
  %s1 = inlined_call_operand.vmem [shape: bf16[128,256], index: 1, kind: input, shape index: {}]
  %s2 = inlined_call_operand.vmem [shape: f32[1,256], index: 2, kind: input, shape index: {}]
  %s3 = inlined_call_operand.vmem [shape: bf16[256,256], index: 3, kind: input, shape index: {}]
  %s4 = inlined_call_operand.vmem [shape: f32[1,256], index: 4, kind: input, shape index: {}]
  %s5 = inlined_call_operand.vmem [shape: bf16[256,128], index: 5, kind: input, shape index: {}]
  %s6 = inlined_call_operand.vmem [shape: f32[1,128], index: 6, kind: input, shape index: {}]
  %s7 = inlined_call_operand.vmem [shape: bf16[1,128], index: 7, kind: output, shape index: {}]
  %s8 = sld [smem:[#allocation0]]
  $region38: #{generator_forward.1} parent=0
    _
  %s10 = ssub.s32 1, %s8
  %s11 = scalar_select 0, %s10, %s8
  // Predicated region
  $region2: #{generator_forward.1} parent=0 // pred_check
    _
  $region3: #{generator_forward.1} parent=0 // pred_check_branch
    %13 = sbr.rel (0) target = $region5
  $region4: #{generator_forward.1} parent=0 // pred_region
    _
  $region5: #{generator_forward.1} parent=0 // pred_fallthru
    _
  // Predicated region
  $region6: #{generator_forward.1} parent=0 // pred_check
    _
  $region7: #{generator_forward.1} parent=0 // pred_check_branch
    %15 = sbr.rel (0) target = $region9
  $region8: #{generator_forward.1} parent=0 // pred_region
    _
  $region9: #{generator_forward.1} parent=0 // pred_fallthru
    _
  // Predicated region
  $region10: #{generator_forward.1} parent=0 // pred_check
    _
  $region11: #{generator_forward.1} parent=0 // pred_check_branch
    %17 = sbr.rel (0) target = $region13
  $region12: #{generator_forward.1} parent=0 // pred_region
    _
  $region13: #{generator_forward.1} parent=0 // pred_fallthru
    _
  // Predicated region
  $region14: #{generator_forward.1} parent=0 // pred_check
    _
  $region15: #{generator_forward.1} parent=0 // pred_check_branch
    %19 = sbr.rel (0) target = $region17
  $region16: #{generator_forward.1} parent=0 // pred_region
    _
  $region17: #{generator_forward.1} parent=0 // pred_fallthru
    _
  // Predicated region
  $region18: #{generator_forward.1} parent=0 // pred_check
    _
  $region19: #{generator_forward.1} parent=0 // pred_check_branch
    %21 = sbr.rel (0) target = $region21
  $region20: #{generator_forward.1} parent=0 // pred_region
    _
  $region21: #{generator_forward.1} parent=0 // pred_fallthru
    _
  // Predicated region
  $region22: #{generator_forward.1} parent=0 // pred_check
    _
  $region23: #{generator_forward.1} parent=0 // pred_check_branch
    %23 = sbr.rel (0) target = $region25
  $region24: #{generator_forward.1} parent=0 // pred_region
    _
  $region25: #{generator_forward.1} parent=0 // pred_fallthru
    _
  // Predicated region
  $region26: #{generator_forward.1} parent=0 // pred_check
    _
  $region27: #{generator_forward.1} parent=0 // pred_check_branch
    %25 = sbr.rel (0) target = $region29
  $region28: #{generator_forward.1} parent=0 // pred_region
    _
  $region29: #{generator_forward.1} parent=0 // pred_fallthru
    _
  %v27 = vld [vmem:[%s0] sm:$0x1]
  %v28 = vpack.c.bf16 %v27, %v27
  %v29 = vld [vmem:[%s1] sm:$0xff]
  %v30 = vld [vmem:[%s1 + $0x8] sm:$0xff]
  %v31 = vld [vmem:[%s1 + $0x10] sm:$0xff]
  %v32 = vld [vmem:[%s1 + $0x18] sm:$0xff]
  %v33 = vld [vmem:[%s1 + $0x20] sm:$0xff]
  %v34 = vld [vmem:[%s1 + $0x28] sm:$0xff]
  %v35 = vld [vmem:[%s1 + $0x30] sm:$0xff]
  %v36 = vld [vmem:[%s1 + $0x38] sm:$0xff]
  %v37 = vld [vmem:[%s1 + $0x40] sm:$0xff]
  %v38 = vld [vmem:[%s1 + $0x48] sm:$0xff]
  %v39 = vld [vmem:[%s1 + $0x50] sm:$0xff]
  %v40 = vld [vmem:[%s1 + $0x58] sm:$0xff]
  %v41 = vld [vmem:[%s1 + $0x60] sm:$0xff]
  %v42 = vld [vmem:[%s1 + $0x68] sm:$0xff]
  %v43 = vld [vmem:[%s1 + $0x70] sm:$0xff]
  %v44 = vld [vmem:[%s1 + $0x78] sm:$0xff]
  %v45 = vld [vmem:[%s2] sm:$0x3]
  %v62 = vunpack.c.l.b16 %v29
  %v63 = vunpack.c.h.b16 %v29
  %v64 = vunpack.c.l.b16 %v30
  %v65 = vunpack.c.h.b16 %v30
  %v66 = vunpack.c.l.b16 %v31
  %v67 = vunpack.c.h.b16 %v31
  %v68 = vunpack.c.l.b16 %v32
  %v69 = vunpack.c.h.b16 %v32
  %v70 = vunpack.c.l.b16 %v33
  %v71 = vunpack.c.h.b16 %v33
  %v72 = vunpack.c.l.b16 %v34
  %v73 = vunpack.c.h.b16 %v34
  %v74 = vunpack.c.l.b16 %v35
  %v75 = vunpack.c.h.b16 %v35
  %v76 = vunpack.c.l.b16 %v36
  %v77 = vunpack.c.h.b16 %v36
  %v78 = vunpack.c.l.b16 %v37
  %v79 = vunpack.c.h.b16 %v37
  %v80 = vunpack.c.l.b16 %v38
  %v81 = vunpack.c.h.b16 %v38
  %v82 = vunpack.c.l.b16 %v39
  %v83 = vunpack.c.h.b16 %v39
  %v84 = vunpack.c.l.b16 %v40
  %v85 = vunpack.c.h.b16 %v40
  %v86 = vunpack.c.l.b16 %v41
  %v87 = vunpack.c.h.b16 %v41
  %v88 = vunpack.c.l.b16 %v42
  %v89 = vunpack.c.h.b16 %v42
  %v90 = vunpack.c.l.b16 %v43
  %v91 = vunpack.c.h.b16 %v43
  %v92 = vunpack.c.l.b16 %v44
  %v93 = vunpack.c.h.b16 %v44
  %v94 = vpack.c.b16 %v64, %v62
  %v95 = vpack.c.b16 %v65, %v63
  %v96 = vpack.c.b16 %v68, %v66
  %v97 = vpack.c.b16 %v69, %v67
  %v98 = vpack.c.b16 %v72, %v70
  %v99 = vpack.c.b16 %v73, %v71
  %v100 = vpack.c.b16 %v76, %v74
  %v101 = vpack.c.b16 %v77, %v75
  %v102 = vpack.c.b16 %v80, %v78
  %v103 = vpack.c.b16 %v81, %v79
  %v104 = vpack.c.b16 %v84, %v82
  %v105 = vpack.c.b16 %v85, %v83
  %v106 = vpack.c.b16 %v88, %v86
  %v107 = vpack.c.b16 %v89, %v87
  %v108 = vpack.c.b16 %v92, %v90
  %v109 = vpack.c.b16 %v93, %v91
  %v127 = vlaneseq
  %v128 = vshrl.u32 %v127, 7
  %v129 = vsub.s32 0, %v128
  %v130 = vrot.slane %v45, %v129
  %v131 = vlaneseq
  %v132 = vshrl.u32 %v131, 7
  %v133 = vsub.s32 1, %v132
  %v134 = vrot.slane %v45, %v133
  %137 = vmatprep.subr.bf16.mxu0 %v95
  %138 = vmatpush1.bf16.msra.mxu0 %v94
  %139 = vmatprep.subr.bf16.mxu0 %v97
  %140 = vmatpush1.bf16.msra.mxu0 %v96
  %141 = vmatprep.subr.bf16.mxu0 %v99
  %142 = vmatpush1.bf16.msra.mxu0 %v98
  %143 = vmatprep.subr.bf16.mxu0 %v101
  %144 = vmatpush1.bf16.msra.mxu0 %v100
  %145 = vmatprep.subr.bf16.mxu0 %v103
  %146 = vmatpush1.bf16.msra.mxu0 %v102
  %147 = vmatprep.subr.bf16.mxu0 %v105
  %148 = vmatpush1.bf16.msra.mxu0 %v104
  %149 = vmatprep.subr.bf16.mxu0 %v107
  %150 = vmatpush1.bf16.msra.mxu0 %v106
  %151 = vmatprep.subr.bf16.mxu0 %v109
  %152 = vmatpush1.bf16.msra.mxu0 %v108
  %153 = vmatprep.subr.bf16.mxu0 0
  %154 = vmatpush1.bf16.msra.mxu0 0
  %155 = vmatprep.subr.bf16.mxu0 0
  %156 = vmatpush1.bf16.msra.mxu0 0
  %157 = vmatprep.subr.bf16.mxu0 0
  %158 = vmatpush1.bf16.msra.mxu0 0
  %159 = vmatprep.subr.bf16.mxu0 0
  %160 = vmatpush1.bf16.msra.mxu0 0
  %161 = vmatprep.subr.bf16.mxu0 0
  %162 = vmatpush1.bf16.msra.mxu0 0
  %163 = vmatprep.subr.bf16.mxu0 0
  %164 = vmatpush1.bf16.msra.mxu0 0
  %165 = vmatprep.subr.bf16.mxu0 0
  %166 = vmatpush1.bf16.msra.mxu0 0
  %167 = vmatprep.subr.bf16.mxu0 0
  %168 = vmatpush1.bf16.msra.mxu0 0
  %169 = vmatprep.mubr.bf16.mxu0 0
  %170 = vmatmul.mubr.bf16.gmra.mrb[0].mxu0 %v28
  %v171 = vpop.f32.mrb[0].mxu0
  %v172 = vadd.f32 %v130, %v171
  %v173 = vpop.f32.mrb[0].mxu0
  %v174 = vadd.f32 %v134, %v173
  %v175 = vpop.f32.mrb[0].mxu0
  %v176 = vpop.f32.mrb[0].mxu0
  %177 = vdwg.mxu0
  %v178 = vmax.f32 %v172, 0.0
  %v179 = vmax.f32 %v174, 0.0
  %v180 = vpack.c.bf16 %v178, %v178
  %v181 = vpack.c.bf16 %v179, %v179
  %v182 = vld [vmem:[%s3] sm:$0xff]
  %v183 = vld [vmem:[%s3 + $0x8] sm:$0xff]
  %v184 = vld [vmem:[%s3 + $0x10] sm:$0xff]
  %v185 = vld [vmem:[%s3 + $0x18] sm:$0xff]
  %v186 = vld [vmem:[%s3 + $0x20] sm:$0xff]
  %v187 = vld [vmem:[%s3 + $0x28] sm:$0xff]
  %v188 = vld [vmem:[%s3 + $0x30] sm:$0xff]
  %v189 = vld [vmem:[%s3 + $0x38] sm:$0xff]
  %v190 = vld [vmem:[%s3 + $0x40] sm:$0xff]
  %v191 = vld [vmem:[%s3 + $0x48] sm:$0xff]
  %v192 = vld [vmem:[%s3 + $0x50] sm:$0xff]
  %v193 = vld [vmem:[%s3 + $0x58] sm:$0xff]
  %v194 = vld [vmem:[%s3 + $0x60] sm:$0xff]
  %v195 = vld [vmem:[%s3 + $0x68] sm:$0xff]
  %v196 = vld [vmem:[%s3 + $0x70] sm:$0xff]
  %v197 = vld [vmem:[%s3 + $0x78] sm:$0xff]
  %v198 = vld [vmem:[%s3 + $0x80] sm:$0xff]
  %v199 = vld [vmem:[%s3 + $0x88] sm:$0xff]
  %v200 = vld [vmem:[%s3 + $0x90] sm:$0xff]
  %v201 = vld [vmem:[%s3 + $0x98] sm:$0xff]
  %v202 = vld [vmem:[%s3 + $0xa0] sm:$0xff]
  %v203 = vld [vmem:[%s3 + $0xa8] sm:$0xff]
  %v204 = vld [vmem:[%s3 + $0xb0] sm:$0xff]
  %v205 = vld [vmem:[%s3 + $0xb8] sm:$0xff]
  %v206 = vld [vmem:[%s3 + $0xc0] sm:$0xff]
  %v207 = vld [vmem:[%s3 + $0xc8] sm:$0xff]
  %v208 = vld [vmem:[%s3 + $0xd0] sm:$0xff]
  %v209 = vld [vmem:[%s3 + $0xd8] sm:$0xff]
  %v210 = vld [vmem:[%s3 + $0xe0] sm:$0xff]
  %v211 = vld [vmem:[%s3 + $0xe8] sm:$0xff]
  %v212 = vld [vmem:[%s3 + $0xf0] sm:$0xff]
  %v213 = vld [vmem:[%s3 + $0xf8] sm:$0xff]
  %v214 = vld [vmem:[%s4] sm:$0x3]
  %v247 = vunpack.c.l.b16 %v182
  %v248 = vunpack.c.h.b16 %v182
  %v249 = vunpack.c.l.b16 %v183
  %v250 = vunpack.c.h.b16 %v183
  %v251 = vunpack.c.l.b16 %v184
  %v252 = vunpack.c.h.b16 %v184
  %v253 = vunpack.c.l.b16 %v185
  %v254 = vunpack.c.h.b16 %v185
  %v255 = vunpack.c.l.b16 %v186
  %v256 = vunpack.c.h.b16 %v186
  %v257 = vunpack.c.l.b16 %v187
  %v258 = vunpack.c.h.b16 %v187
  %v259 = vunpack.c.l.b16 %v188
  %v260 = vunpack.c.h.b16 %v188
  %v261 = vunpack.c.l.b16 %v189
  %v262 = vunpack.c.h.b16 %v189
  %v263 = vunpack.c.l.b16 %v190
  %v264 = vunpack.c.h.b16 %v190
  %v265 = vunpack.c.l.b16 %v191
  %v266 = vunpack.c.h.b16 %v191
  %v267 = vunpack.c.l.b16 %v192
  %v268 = vunpack.c.h.b16 %v192
  %v269 = vunpack.c.l.b16 %v193
  %v270 = vunpack.c.h.b16 %v193
  %v271 = vunpack.c.l.b16 %v194
  %v272 = vunpack.c.h.b16 %v194
  %v273 = vunpack.c.l.b16 %v195
  %v274 = vunpack.c.h.b16 %v195
  %v275 = vunpack.c.l.b16 %v196
  %v276 = vunpack.c.h.b16 %v196
  %v277 = vunpack.c.l.b16 %v197
  %v278 = vunpack.c.h.b16 %v197
  %v279 = vunpack.c.l.b16 %v198
  %v280 = vunpack.c.h.b16 %v198
  %v281 = vunpack.c.l.b16 %v199
  %v282 = vunpack.c.h.b16 %v199
  %v283 = vunpack.c.l.b16 %v200
  %v284 = vunpack.c.h.b16 %v200
  %v285 = vunpack.c.l.b16 %v201
  %v286 = vunpack.c.h.b16 %v201
  %v287 = vunpack.c.l.b16 %v202
  %v288 = vunpack.c.h.b16 %v202
  %v289 = vunpack.c.l.b16 %v203
  %v290 = vunpack.c.h.b16 %v203
  %v291 = vunpack.c.l.b16 %v204
  %v292 = vunpack.c.h.b16 %v204
  %v293 = vunpack.c.l.b16 %v205
  %v294 = vunpack.c.h.b16 %v205
  %v295 = vunpack.c.l.b16 %v206
  %v296 = vunpack.c.h.b16 %v206
  %v297 = vunpack.c.l.b16 %v207
  %v298 = vunpack.c.h.b16 %v207
  %v299 = vunpack.c.l.b16 %v208
  %v300 = vunpack.c.h.b16 %v208
  %v301 = vunpack.c.l.b16 %v209
  %v302 = vunpack.c.h.b16 %v209
  %v303 = vunpack.c.l.b16 %v210
  %v304 = vunpack.c.h.b16 %v210
  %v305 = vunpack.c.l.b16 %v211
  %v306 = vunpack.c.h.b16 %v211
  %v307 = vunpack.c.l.b16 %v212
  %v308 = vunpack.c.h.b16 %v212
  %v309 = vunpack.c.l.b16 %v213
  %v310 = vunpack.c.h.b16 %v213
  %v311 = vpack.c.b16 %v249, %v247
  %v312 = vpack.c.b16 %v250, %v248
  %v313 = vpack.c.b16 %v253, %v251
  %v314 = vpack.c.b16 %v254, %v252
  %v315 = vpack.c.b16 %v257, %v255
  %v316 = vpack.c.b16 %v258, %v256
  %v317 = vpack.c.b16 %v261, %v259
  %v318 = vpack.c.b16 %v262, %v260
  %v319 = vpack.c.b16 %v265, %v263
  %v320 = vpack.c.b16 %v266, %v264
  %v321 = vpack.c.b16 %v269, %v267
  %v322 = vpack.c.b16 %v270, %v268
  %v323 = vpack.c.b16 %v273, %v271
  %v324 = vpack.c.b16 %v274, %v272
  %v325 = vpack.c.b16 %v277, %v275
  %v326 = vpack.c.b16 %v278, %v276
  %v327 = vpack.c.b16 %v281, %v279
  %v328 = vpack.c.b16 %v282, %v280
  %v329 = vpack.c.b16 %v285, %v283
  %v330 = vpack.c.b16 %v286, %v284
  %v331 = vpack.c.b16 %v289, %v287
  %v332 = vpack.c.b16 %v290, %v288
  %v333 = vpack.c.b16 %v293, %v291
  %v334 = vpack.c.b16 %v294, %v292
  %v335 = vpack.c.b16 %v297, %v295
  %v336 = vpack.c.b16 %v298, %v296
  %v337 = vpack.c.b16 %v301, %v299
  %v338 = vpack.c.b16 %v302, %v300
  %v339 = vpack.c.b16 %v305, %v303
  %v340 = vpack.c.b16 %v306, %v304
  %v341 = vpack.c.b16 %v309, %v307
  %v342 = vpack.c.b16 %v310, %v308
  %v376 = vlaneseq
  %v377 = vshrl.u32 %v376, 7
  %v378 = vsub.s32 0, %v377
  %v379 = vrot.slane %v214, %v378
  %v380 = vlaneseq
  %v381 = vshrl.u32 %v380, 7
  %v382 = vsub.s32 1, %v381
  %v383 = vrot.slane %v214, %v382
  %386 = vmatprep.subr.bf16.mxu0 %v312
  %387 = vmatpush1.bf16.msra.mxu0 %v311
  %388 = vmatprep.subr.bf16.mxu0 %v314
  %389 = vmatpush1.bf16.msra.mxu0 %v313
  %390 = vmatprep.subr.bf16.mxu0 %v316
  %391 = vmatpush1.bf16.msra.mxu0 %v315
  %392 = vmatprep.subr.bf16.mxu0 %v318
  %393 = vmatpush1.bf16.msra.mxu0 %v317
  %394 = vmatprep.subr.bf16.mxu0 %v320
  %395 = vmatpush1.bf16.msra.mxu0 %v319
  %396 = vmatprep.subr.bf16.mxu0 %v322
  %397 = vmatpush1.bf16.msra.mxu0 %v321
  %398 = vmatprep.subr.bf16.mxu0 %v324
  %399 = vmatpush1.bf16.msra.mxu0 %v323
  %400 = vmatprep.subr.bf16.mxu0 %v326
  %401 = vmatpush1.bf16.msra.mxu0 %v325
  %402 = vmatprep.subr.bf16.mxu0 %v328
  %403 = vmatpush1.bf16.msra.mxu0 %v327
  %404 = vmatprep.subr.bf16.mxu0 %v330
  %405 = vmatpush1.bf16.msra.mxu0 %v329
  %406 = vmatprep.subr.bf16.mxu0 %v332
  %407 = vmatpush1.bf16.msra.mxu0 %v331
  %408 = vmatprep.subr.bf16.mxu0 %v334
  %409 = vmatpush1.bf16.msra.mxu0 %v333
  %410 = vmatprep.subr.bf16.mxu0 %v336
  %411 = vmatpush1.bf16.msra.mxu0 %v335
  %412 = vmatprep.subr.bf16.mxu0 %v338
  %413 = vmatpush1.bf16.msra.mxu0 %v337
  %414 = vmatprep.subr.bf16.mxu0 %v340
  %415 = vmatpush1.bf16.msra.mxu0 %v339
  %416 = vmatprep.subr.bf16.mxu0 %v342
  %417 = vmatpush1.bf16.msra.mxu0 %v341
  %418 = vmatprep.mubr.bf16.mxu0 %v181
  %419 = vmatmul.mubr.bf16.gmra.mrb[0].mxu0 %v180
  %v420 = vpop.f32.mrb[0].mxu0
  %v421 = vadd.f32 %v379, %v420
  %v422 = vpop.f32.mrb[0].mxu0
  %v423 = vadd.f32 %v383, %v422
  %v424 = vpop.f32.mrb[0].mxu0
  %v425 = vpop.f32.mrb[0].mxu0
  %426 = vdwg.mxu0
  %v427 = vmax.f32 %v421, 0.0
  %v428 = vmax.f32 %v423, 0.0
  %v429 = vpack.c.bf16 %v427, %v427
  %v430 = vpack.c.bf16 %v428, %v428
  %v431 = vld [vmem:[%s5] sm:$0xf]
  %v432 = vld [vmem:[%s5 + $0x4] sm:$0xf]
  %v433 = vld [vmem:[%s5 + $0x8] sm:$0xf]
  %v434 = vld [vmem:[%s5 + $0xc] sm:$0xf]
  %v435 = vld [vmem:[%s5 + $0x10] sm:$0xf]
  %v436 = vld [vmem:[%s5 + $0x14] sm:$0xf]
  %v437 = vld [vmem:[%s5 + $0x18] sm:$0xf]
  %v438 = vld [vmem:[%s5 + $0x1c] sm:$0xf]
  %v439 = vld [vmem:[%s5 + $0x20] sm:$0xf]
  %v440 = vld [vmem:[%s5 + $0x24] sm:$0xf]
  %v441 = vld [vmem:[%s5 + $0x28] sm:$0xf]
  %v442 = vld [vmem:[%s5 + $0x2c] sm:$0xf]
  %v443 = vld [vmem:[%s5 + $0x30] sm:$0xf]
  %v444 = vld [vmem:[%s5 + $0x34] sm:$0xf]
  %v445 = vld [vmem:[%s5 + $0x38] sm:$0xf]
  %v446 = vld [vmem:[%s5 + $0x3c] sm:$0xf]
  %v447 = vld [vmem:[%s5 + $0x40] sm:$0xf]
  %v448 = vld [vmem:[%s5 + $0x44] sm:$0xf]
  %v449 = vld [vmem:[%s5 + $0x48] sm:$0xf]
  %v450 = vld [vmem:[%s5 + $0x4c] sm:$0xf]
  %v451 = vld [vmem:[%s5 + $0x50] sm:$0xf]
  %v452 = vld [vmem:[%s5 + $0x54] sm:$0xf]
  %v453 = vld [vmem:[%s5 + $0x58] sm:$0xf]
  %v454 = vld [vmem:[%s5 + $0x5c] sm:$0xf]
  %v455 = vld [vmem:[%s5 + $0x60] sm:$0xf]
  %v456 = vld [vmem:[%s5 + $0x64] sm:$0xf]
  %v457 = vld [vmem:[%s5 + $0x68] sm:$0xf]
  %v458 = vld [vmem:[%s5 + $0x6c] sm:$0xf]
  %v459 = vld [vmem:[%s5 + $0x70] sm:$0xf]
  %v460 = vld [vmem:[%s5 + $0x74] sm:$0xf]
  %v461 = vld [vmem:[%s5 + $0x78] sm:$0xf]
  %v462 = vld [vmem:[%s5 + $0x7c] sm:$0xf]
  %v463 = vld [vmem:[%s6] sm:$0x1]
  %v496 = vunpack.c.l.b16 %v431
  %v497 = vunpack.c.l.b16 %v432
  %v498 = vunpack.c.l.b16 %v433
  %v499 = vunpack.c.l.b16 %v434
  %v500 = vunpack.c.l.b16 %v435
  %v501 = vunpack.c.l.b16 %v436
  %v502 = vunpack.c.l.b16 %v437
  %v503 = vunpack.c.l.b16 %v438
  %v504 = vunpack.c.l.b16 %v439
  %v505 = vunpack.c.l.b16 %v440
  %v506 = vunpack.c.l.b16 %v441
  %v507 = vunpack.c.l.b16 %v442
  %v508 = vunpack.c.l.b16 %v443
  %v509 = vunpack.c.l.b16 %v444
  %v510 = vunpack.c.l.b16 %v445
  %v511 = vunpack.c.l.b16 %v446
  %v512 = vunpack.c.l.b16 %v447
  %v513 = vunpack.c.l.b16 %v448
  %v514 = vunpack.c.l.b16 %v449
  %v515 = vunpack.c.l.b16 %v450
  %v516 = vunpack.c.l.b16 %v451
  %v517 = vunpack.c.l.b16 %v452
  %v518 = vunpack.c.l.b16 %v453
  %v519 = vunpack.c.l.b16 %v454
  %v520 = vunpack.c.l.b16 %v455
  %v521 = vunpack.c.l.b16 %v456
  %v522 = vunpack.c.l.b16 %v457
  %v523 = vunpack.c.l.b16 %v458
  %v524 = vunpack.c.l.b16 %v459
  %v525 = vunpack.c.l.b16 %v460
  %v526 = vunpack.c.l.b16 %v461
  %v527 = vunpack.c.l.b16 %v462
  %v528 = vpack.c.b16 %v497, %v496
  %v529 = vpack.c.b16 %v499, %v498
  %v530 = vpack.c.b16 %v501, %v500
  %v531 = vpack.c.b16 %v503, %v502
  %v532 = vpack.c.b16 %v505, %v504
  %v533 = vpack.c.b16 %v507, %v506
  %v534 = vpack.c.b16 %v509, %v508
  %v535 = vpack.c.b16 %v511, %v510
  %v536 = vpack.c.b16 %v513, %v512
  %v537 = vpack.c.b16 %v515, %v514
  %v538 = vpack.c.b16 %v517, %v516
  %v539 = vpack.c.b16 %v519, %v518
  %v540 = vpack.c.b16 %v521, %v520
  %v541 = vpack.c.b16 %v523, %v522
  %v542 = vpack.c.b16 %v525, %v524
  %v543 = vpack.c.b16 %v527, %v526
  %560 = vmatprep.subr.bf16.mxu0 0
  %561 = vmatpush1.bf16.msra.mxu0 %v528
  %562 = vmatprep.subr.bf16.mxu0 0
  %563 = vmatpush1.bf16.msra.mxu0 %v529
  %564 = vmatprep.subr.bf16.mxu0 0
  %565 = vmatpush1.bf16.msra.mxu0 %v530
  %566 = vmatprep.subr.bf16.mxu0 0
  %567 = vmatpush1.bf16.msra.mxu0 %v531
  %568 = vmatprep.subr.bf16.mxu0 0
  %569 = vmatpush1.bf16.msra.mxu0 %v532
  %570 = vmatprep.subr.bf16.mxu0 0
  %571 = vmatpush1.bf16.msra.mxu0 %v533
  %572 = vmatprep.subr.bf16.mxu0 0
  %573 = vmatpush1.bf16.msra.mxu0 %v534
  %574 = vmatprep.subr.bf16.mxu0 0
  %575 = vmatpush1.bf16.msra.mxu0 %v535
  %576 = vmatprep.subr.bf16.mxu0 0
  %577 = vmatpush1.bf16.msra.mxu0 %v536
  %578 = vmatprep.subr.bf16.mxu0 0
  %579 = vmatpush1.bf16.msra.mxu0 %v537
  %580 = vmatprep.subr.bf16.mxu0 0
  %581 = vmatpush1.bf16.msra.mxu0 %v538
  %582 = vmatprep.subr.bf16.mxu0 0
  %583 = vmatpush1.bf16.msra.mxu0 %v539
  %584 = vmatprep.subr.bf16.mxu0 0
  %585 = vmatpush1.bf16.msra.mxu0 %v540
  %586 = vmatprep.subr.bf16.mxu0 0
  %587 = vmatpush1.bf16.msra.mxu0 %v541
  %588 = vmatprep.subr.bf16.mxu0 0
  %589 = vmatpush1.bf16.msra.mxu0 %v542
  %590 = vmatprep.subr.bf16.mxu0 0
  %591 = vmatpush1.bf16.msra.mxu0 %v543
  %592 = vmatprep.mubr.bf16.mxu0 %v430
  %593 = vmatmul.mubr.bf16.gmra.mrb[0].mxu0 %v429
  %v594 = vpop.f32.mrb[0].mxu0
  %v595 = vadd.f32 %v463, %v594
  %v596 = vpop.f32.mrb[0].mxu0
  %v597 = vpop.f32.mrb[0].mxu0
  %v598 = vpop.f32.mrb[0].mxu0
  %599 = vdwg.mxu0
  %v600 = vpack.c.bf16 %v595, %v595
  %vm601 = vcmask 1040384
  %vm602 = vsmask.f32 256
  %vm603 = vmand %vm601, %vm602
  %v604 = vld [vmem:[%s7] sm:$0x1]
  %v605 = vsel %vm603, %v600, %v604
  %606 = vst [vmem:[%s7] sm:$0x1] %v605
  // Predicated region
  $region30: #{generator_forward.1} parent=0 // pred_check
    _
  $region31: #{generator_forward.1} parent=0 // pred_check_branch
    %608 = sbr.rel (0) target = $region33
  $region32: #{generator_forward.1} parent=0 // pred_region
    _
  $region33: #{generator_forward.1} parent=0 // pred_fallthru
    _
  // Predicated region
  $region34: #{generator_forward.1} parent=0 // pred_check
    _
  $region35: #{generator_forward.1} parent=0 // pred_check_branch
    %610 = sbr.rel (0) target = $region37
  $region36: #{generator_forward.1} parent=0 // pred_region
    _
  $region37: #{generator_forward.1} parent=0 // pred_fallthru
    _

</llo_original>
